<compile_context>
chip_gen: v6e
topology: v6e:2x2x1
jax: 0.10.0
libtpu: 0.0.40
codegen_flags: <defaults>
</compile_context>

<pallas_src>
import jax
import jax.numpy as jnp
from jax import lax
from jax.experimental import pallas as pl
from jax.experimental.pallas import tpu as pltpu

NUM_FILTER_MAPS = 100   # fixed inside the PyTorch module
KERNEL_SIZE = 3
LANE = 128


def _round_up(x, m):
    return ((x + m - 1) // m) * m


def _caml_kernel(x_ref, mask_ref, wcat_ref, cb_ref, ut_ref, fwt_ref, fb_ref,
                 out_ref, h_scr):
    # x_ref:    (TB*L, E)   bf16  embedded tokens (batch folded into rows)
    # mask_ref: (TB*L, 1)   f32   attention mask
    # wcat_ref: (Kp, Fp)    bf16  stacked conv taps [tap0; tap1; tap2; 0-pad]
    # cb_ref:   (1, Fp)     f32   conv bias (F-padded)
    # ut_ref:   (Fp, TC)    bf16  U.weight^T      (current class tile)
    # fwt_ref:  (Fp, TC)    bf16  final.weight^T  (current class tile)
    # fb_ref:   (1, TC)     f32   final.bias      (current class tile)
    # out_ref:  (TB, TC)    f32
    # h_scr:    (TB*L, Fp)  bf16  tanh(conv) activations, reused across C tiles
    n, E = x_ref.shape
    Kp, Fp = wcat_ref.shape
    TB, TC = out_ref.shape
    L = n // TB

    # ---- conv + tanh: compute once per batch block, reuse for every C tile ----
    @pl.when(pl.program_id(1) == 0)
    def _():
        xm = x_ref[...].astype(jnp.float32) * mask_ref[...]          # [n, E] f32
        # 3-tap shifts along the flattened sequence axis; rows that would cross
        # a sequence boundary are zeroed (Conv1d zero padding).
        pos = lax.broadcasted_iota(jnp.int32, (n, 1), 0) % L
        zrow = jnp.zeros((1, E), jnp.float32)
        x_prev = jnp.concatenate([zrow, xm[:n - 1, :]], axis=0)      # row l -> x[l-1]
        x_prev = jnp.where(pos == 0, 0.0, x_prev)
        x_next = jnp.concatenate([xm[1:, :], zrow], axis=0)          # row l -> x[l+1]
        x_next = jnp.where(pos == L - 1, 0.0, x_next)
        parts = [x_prev, xm, x_next]
        if Kp > 3 * E:
            parts.append(jnp.zeros((n, Kp - 3 * E), jnp.float32))
        x_cat = jnp.concatenate(parts, axis=-1).astype(jnp.bfloat16)  # [n, Kp]
        h = jnp.dot(x_cat, wcat_ref[...],
                    preferred_element_type=jnp.float32) + cb_ref[...]
        h_scr[...] = jnp.tanh(h).astype(jnp.bfloat16)

    hbf = h_scr[...]                                                  # [n, Fp] bf16

    # attention scores and final-weight projection: two lane-dense MXU matmuls
    s = jnp.dot(hbf, ut_ref[...], preferred_element_type=jnp.float32)   # [n, TC]
    g = jnp.dot(hbf, fwt_ref[...], preferred_element_type=jnp.float32)  # [n, TC]

    s3 = s.reshape(TB, L, TC)
    g3 = g.reshape(TB, L, TC)
    s3 = s3 - jnp.max(s3, axis=1, keepdims=True)                     # softmax over L
    e3 = jnp.exp(s3)
    num = jnp.sum(e3 * g3, axis=1)                                    # [TB, TC]
    den = jnp.sum(e3, axis=1)                                         # [TB, TC]
    y = num * pl.reciprocal(den, approx=True) + fb_ref[...]
    out_ref[...] = y.astype(out_ref.dtype)


def caml_forward(x_emb, attention_mask, conv_w, conv_b, u_w, final_w, final_b,
                 *, batch_block=8, class_block=LANE):
    """x_emb: [B, L, E] float32, attention_mask: [B, L] -> [B, C] float32."""
    B, L, E = x_emb.shape
    C, F_ = u_w.shape
    f32 = jnp.float32

    Fp = _round_up(F_, LANE)          # padded filter dim      (100 -> 128)
    Kp = _round_up(3 * E, LANE)       # padded fused conv K    (96  -> 128)
    Cp = _round_up(C, LANE)           # padded class dim (lane-dense output)
    TC = min(class_block, Cp)         # class tile (per grid step)
    TB = min(batch_block, B)          # batch tile (per grid step)
    Bp = _round_up(B, TB)
    n_blk = TB * L

    # --- fused + padded conv weights: [tap0; tap1; tap2] stacked along K ---
    w_cat = jnp.zeros((Kp, Fp), f32)
    w_cat = w_cat.at[0:E, 0:F_].set(conv_w[:, :, 0].T)
    w_cat = w_cat.at[E:2 * E, 0:F_].set(conv_w[:, :, 1].T)
    w_cat = w_cat.at[2 * E:3 * E, 0:F_].set(conv_w[:, :, 2].T)
    w_cat = w_cat.astype(jnp.bfloat16)

    cb = jnp.zeros((1, Fp), f32).at[0, :F_].set(conv_b)
    u_t = jnp.zeros((Fp, Cp), f32).at[:F_, :C].set(u_w.T).astype(jnp.bfloat16)
    fw_t = jnp.zeros((Fp, Cp), f32).at[:F_, :C].set(final_w.T).astype(jnp.bfloat16)
    fb = jnp.zeros((1, Cp), f32).at[0, :C].set(final_b)

    # --- activations: bf16 in HBM (halved traffic), batch padded to Bp ---
    x_p = jnp.zeros((Bp, L, E), jnp.bfloat16).at[:B].set(x_emb.astype(jnp.bfloat16))
    x_p = x_p.reshape(Bp * L, E)
    m_p = jnp.zeros((Bp, L, 1), f32).at[:B].set(attention_mask[..., None].astype(f32))
    m_p = m_p.reshape(Bp * L, 1)

    grid = (Bp // TB, Cp // TC)

    out = pl.pallas_call(
        _caml_kernel,
        out_shape=jax.ShapeDtypeStruct((Bp, Cp), f32),
        grid=grid,
        in_specs=[
            pl.BlockSpec((n_blk, E), lambda b, c: (b, 0)),   # embedded tokens
            pl.BlockSpec((n_blk, 1), lambda b, c: (b, 0)),   # attention mask
            pl.BlockSpec((Kp, Fp), lambda b, c: (0, 0)),     # fused conv weight
            pl.BlockSpec((1, Fp), lambda b, c: (0, 0)),      # conv bias
            pl.BlockSpec((Fp, TC), lambda b, c: (0, c)),     # U.weight^T (C tile)
            pl.BlockSpec((Fp, TC), lambda b, c: (0, c)),     # final.weight^T (C tile)
            pl.BlockSpec((1, TC), lambda b, c: (0, c)),      # final.bias (C tile)
        ],
        out_specs=pl.BlockSpec((TB, TC), lambda b, c: (b, c)),
        scratch_shapes=[pltpu.VMEM((n_blk, Fp), jnp.bfloat16)],   # cached tanh(conv)
        compiler_params=pltpu.CompilerParams(
            dimension_semantics=("parallel", "arbitrary"),
            vmem_limit_bytes=32 * 1024 * 1024),
    )(x_p, m_p, w_cat, cb, u_t, fw_t, fb)
    return out[:B, :C]


def caml_ref(x_emb, attention_mask, conv_w, conv_b, u_w, final_w, final_b):
    """Plain-JAX f32 reference matching the PyTorch forward."""
    xm = x_emb * attention_mask[:, :, None]
    xt = jnp.transpose(xm, (0, 2, 1))                          # [B, E, L]
    h = lax.conv_general_dilated(xt, conv_w, (1,), [(1, 1)],
                                 dimension_numbers=("NCH", "OIH", "NCH"))
    h = h + conv_b[None, :, None]
    h = jnp.tanh(jnp.transpose(h, (0, 2, 1)))                  # [B, L, F]
    s = jnp.einsum('cf,blf->bcl', u_w, h)
    alpha = jax.nn.softmax(s, axis=2)
    m = jnp.einsum('bcl,blf->bcf', alpha, h)
    return jnp.sum(final_w[None] * m, axis=2) + final_b[None]


if __name__ == "__main__":
    key = jax.random.PRNGKey(0)
    B, L, E, C, V = 2, 16, 32, 8, 50          # batch, seq, embedding_dim, class_num, vocab
    F_ = NUM_FILTER_MAPS
    ks = jax.random.split(key, 8)

    # deterministic synthetic parameters (shapes from the module __init__)
    tokens = jax.random.randint(ks[0], (B, L), 0, V)
    emb_table = jax.random.normal(ks[1], (V, E), jnp.float32) * 0.1
    conv_w = jax.random.normal(ks[2], (F_, E, KERNEL_SIZE), jnp.float32) * 0.1
    conv_b = jax.random.normal(ks[3], (F_,), jnp.float32) * 0.1
    u_w = jax.random.normal(ks[4], (C, F_), jnp.float32) * 0.1
    final_w = jax.random.normal(ks[5], (C, F_), jnp.float32) * 0.1
    final_b = jax.random.normal(ks[6], (C,), jnp.float32) * 0.1

    # attention mask: seq 0 full length, seq 1 padded after position 10
    lengths = jnp.array([L, 10])
    attention_mask = (jnp.arange(L)[None, :] < lengths[:, None]).astype(jnp.float32)

    # TODO(synk): PLMTokenEncoder (BERT base_layer) branch not implemented;
    # the EmbeddingLayer branch is modeled as a plain-JAX embedding lookup (glue).
    x_emb = jnp.take(emb_table, tokens, axis=0)   # [B, L, E]

    out = jax.block_until_ready(
        caml_forward(x_emb, attention_mask, conv_w, conv_b, u_w, final_w, final_b))
    ref = caml_ref(x_emb, attention_mask, conv_w, conv_b, u_w, final_w, final_b)

    assert out.shape == (B, C), out.shape
    # bf16 MXU operands + approx reciprocal -> slightly looser tolerance than pure f32
    assert jnp.allclose(out, ref, rtol=1e-2, atol=1e-2), (out, ref)
    print("KERNEL_OK")
</pallas_src>

<mosaic_0001>
module attributes {stable_mosaic.version = 11 : i64} {
  func.func @_caml_kernel(%arg0: i32, %arg1: i32, %arg2: memref<32x32xbf16, #tpu.memory_space<vmem>>, %arg3: memref<32x1xf32, #tpu.memory_space<vmem>>, %arg4: memref<128x128xbf16, #tpu.memory_space<vmem>>, %arg5: memref<1x128xf32, #tpu.memory_space<vmem>>, %arg6: memref<128x128xbf16, #tpu.memory_space<vmem>>, %arg7: memref<128x128xbf16, #tpu.memory_space<vmem>>, %arg8: memref<1x128xf32, #tpu.memory_space<vmem>>, %arg9: memref<2x128xf32, #tpu.memory_space<vmem>>, %arg10: memref<32x128xbf16, #tpu.memory_space<vmem>>) attributes {dimension_semantics = [#tpu.dimension_semantics<parallel>, #tpu.dimension_semantics<arbitrary>], iteration_bounds = array<i64: 1, 1>, scalar_prefetch = 0 : i64, scratch_operands = 1 : i64, tpu.core_type = #tpu.core_type<tc>, window_params = [{transform_indices = @transform_0, window_bounds = array<i64: 32, 32>}, {transform_indices = @transform_1, window_bounds = array<i64: 32, 1>}, {pipeline_mode = #tpu.pipeline_mode<synchronous>, transform_indices = @transform_2, window_bounds = array<i64: 128, 128>}, {pipeline_mode = #tpu.pipeline_mode<synchronous>, transform_indices = @transform_3, window_bounds = array<i64: 1, 128>}, {transform_indices = @transform_4, window_bounds = array<i64: 128, 128>}, {transform_indices = @transform_5, window_bounds = array<i64: 128, 128>}, {transform_indices = @transform_6, window_bounds = array<i64: 1, 128>}, {transform_indices = @transform_7, window_bounds = array<i64: 2, 128>}]} {
    %c0_i32 = arith.constant 0 : i32
    %0 = arith.cmpi eq, %arg1, %c0_i32 : i32
    %1 = arith.extui %0 : i1 to i32
    %c0_i32_0 = arith.constant 0 : i32
    %2 = arith.cmpi ne, %1, %c0_i32_0 : i32
    scf.if %2 {
      %c0_14 = arith.constant 0 : index
      %c0_15 = arith.constant 0 : index
      %24 = vector.load %arg2[%c0_14, %c0_15] : memref<32x32xbf16, #tpu.memory_space<vmem>>, vector<32x32xbf16>
      %25 = arith.extf %24 : vector<32x32xbf16> to vector<32x32xf32>
      %c0_16 = arith.constant 0 : index
      %c0_17 = arith.constant 0 : index
      %26 = vector.load %arg3[%c0_16, %c0_17] : memref<32x1xf32, #tpu.memory_space<vmem>>, vector<32x1xf32>
      %27 = vector.broadcast %26 : vector<32x1xf32> to vector<32x32xf32>
      %28 = arith.mulf %25, %27 : vector<32x32xf32>
      %29 = tpu.iota {dimensions = array<i32: 0>} : vector<32x1xi32>
      %c16_i32 = arith.constant 16 : i32
      %c0_i32_18 = arith.constant 0 : i32
      %30 = arith.cmpi eq, %c16_i32, %c0_i32_18 : i32
      %c1_i32 = arith.constant 1 : i32
      %31 = arith.select %30, %c1_i32, %c16_i32 : i32
      %32 = vector.broadcast %31 : i32 to vector<32x1xi32>
      %33 = arith.remsi %29, %32 : vector<32x1xi32>
      %c0_i32_19 = arith.constant 0 : i32
      %34 = vector.broadcast %c0_i32_19 : i32 to vector<32x1xi32>
      %35 = arith.cmpi ne, %33, %34 : vector<32x1xi32>
      %c0_i32_20 = arith.constant 0 : i32
      %36 = vector.broadcast %c0_i32_20 : i32 to vector<32x1xi32>
      %37 = arith.cmpi slt, %33, %36 : vector<32x1xi32>
      %c0_i32_21 = arith.constant 0 : i32
      %38 = arith.cmpi slt, %31, %c0_i32_21 : i32
      %39 = vector.broadcast %38 : i1 to vector<32x1xi1>
      %40 = vector.broadcast %39 : vector<32x1xi1> to vector<32x1xi1>
      %41 = arith.xori %37, %40 : vector<32x1xi1>
      %42 = arith.andi %41, %35 : vector<32x1xi1>
      %43 = vector.broadcast %31 : i32 to vector<32x1xi32>
      %44 = arith.addi %33, %43 : vector<32x1xi32>
      %45 = arith.select %42, %44, %33 : vector<32x1xi1>, vector<32x1xi32>
      %cst_22 = arith.constant 0.000000e+00 : f32
      %46 = vector.broadcast %cst_22 : f32 to vector<1x32xf32>
      %47 = vector.extract_strided_slice %28 {offsets = [0, 0], sizes = [31, 32], strides = [1, 1]} : vector<32x32xf32> to vector<31x32xf32>
      %48 = tpu.concatenate %46, %47 in 0 : vector<1x32xf32>, vector<31x32xf32> -> vector<32x32xf32>
      %c0_i32_23 = arith.constant 0 : i32
      %49 = vector.broadcast %c0_i32_23 : i32 to vector<32x1xi32>
      %50 = arith.cmpi eq, %45, %49 : vector<32x1xi32>
      %cst_24 = arith.constant 0.000000e+00 : f32
      %51 = vector.shape_cast %50 : vector<32x1xi1> to vector<32x1xi1>
      %52 = vector.broadcast %51 : vector<32x1xi1> to vector<32x32xi1>
      %53 = vector.broadcast %cst_24 : f32 to vector<32x32xf32>
      %54 = arith.select %52, %53, %48 : vector<32x32xi1>, vector<32x32xf32>
      %55 = vector.extract_strided_slice %28 {offsets = [1, 0], sizes = [31, 32], strides = [1, 1]} : vector<32x32xf32> to vector<31x32xf32>
      %56 = tpu.concatenate %55, %46 in 0 : vector<31x32xf32>, vector<1x32xf32> -> vector<32x32xf32>
      %c15_i32 = arith.constant 15 : i32
      %57 = vector.broadcast %c15_i32 : i32 to vector<32x1xi32>
      %58 = arith.cmpi eq, %45, %57 : vector<32x1xi32>
      %cst_25 = arith.constant 0.000000e+00 : f32
      %59 = vector.shape_cast %58 : vector<32x1xi1> to vector<32x1xi1>
      %60 = vector.broadcast %59 : vector<32x1xi1> to vector<32x32xi1>
      %61 = vector.broadcast %cst_25 : f32 to vector<32x32xf32>
      %62 = arith.select %60, %61, %56 : vector<32x32xi1>, vector<32x32xf32>
      %cst_26 = arith.constant 0.000000e+00 : f32
      %63 = vector.broadcast %cst_26 : f32 to vector<32x32xf32>
      %64 = tpu.concatenate %54, %28, %62, %63 in 1 : vector<32x32xf32>, vector<32x32xf32>, vector<32x32xf32>, vector<32x32xf32> -> vector<32x128xf32>
      %65 = arith.truncf %64 : vector<32x128xf32> to vector<32x128xbf16>
      %c0_27 = arith.constant 0 : index
      %c0_28 = arith.constant 0 : index
      %66 = vector.load %arg4[%c0_27, %c0_28] : memref<128x128xbf16, #tpu.memory_space<vmem>>, vector<128x128xbf16>
      %cst_29 = arith.constant dense<0.000000e+00> : vector<32x128xf32>
      %67 = tpu.matmul %65, %66, %cst_29 {dimension_numbers = #tpu.dot_dimension_numbers<[1], [0], [0], [1], [0, 0, 1, 1], [], []>} : vector<32x128xbf16>, vector<128x128xbf16>, vector<32x128xf32> -> vector<32x128xf32>
      %c0_30 = arith.constant 0 : index
      %c0_31 = arith.constant 0 : index
      %68 = vector.load %arg5[%c0_30, %c0_31] : memref<1x128xf32, #tpu.memory_space<vmem>>, vector<1x128xf32>
      %69 = vector.broadcast %68 : vector<1x128xf32> to vector<32x128xf32>
      %70 = arith.addf %67, %69 : vector<32x128xf32>
      %71 = math.tanh %70 : vector<32x128xf32>
      %72 = arith.truncf %71 : vector<32x128xf32> to vector<32x128xbf16>
      %c0_32 = arith.constant 0 : index
      %c0_33 = arith.constant 0 : index
      %73 = vector.load %arg10[%c0_32, %c0_33] : memref<32x128xbf16, #tpu.memory_space<vmem>>, vector<32x128xbf16>
      tpu.vector_store %arg10[%c0_32, %c0_33], %72 {strides = array<i32>} : memref<32x128xbf16, #tpu.memory_space<vmem>>, vector<32x128xbf16>,
    } else {
    }
    %c0 = arith.constant 0 : index
    %c0_1 = arith.constant 0 : index
    %3 = vector.load %arg10[%c0, %c0_1] : memref<32x128xbf16, #tpu.memory_space<vmem>>, vector<32x128xbf16>
    %c0_2 = arith.constant 0 : index
    %c0_3 = arith.constant 0 : index
    %4 = vector.load %arg6[%c0_2, %c0_3] : memref<128x128xbf16, #tpu.memory_space<vmem>>, vector<128x128xbf16>
    %cst = arith.constant dense<0.000000e+00> : vector<32x128xf32>
    %5 = tpu.matmul %3, %4, %cst {dimension_numbers = #tpu.dot_dimension_numbers<[1], [0], [0], [1], [0, 0, 1, 1], [], []>} : vector<32x128xbf16>, vector<128x128xbf16>, vector<32x128xf32> -> vector<32x128xf32>
    %c0_4 = arith.constant 0 : index
    %c0_5 = arith.constant 0 : index
    %6 = vector.load %arg7[%c0_4, %c0_5] : memref<128x128xbf16, #tpu.memory_space<vmem>>, vector<128x128xbf16>
    %cst_6 = arith.constant dense<0.000000e+00> : vector<32x128xf32>
    %7 = tpu.matmul %3, %6, %cst_6 {dimension_numbers = #tpu.dot_dimension_numbers<[1], [0], [0], [1], [0, 0, 1, 1], [], []>} : vector<32x128xbf16>, vector<128x128xbf16>, vector<32x128xf32> -> vector<32x128xf32>
    %8 = vector.shape_cast %5 : vector<32x128xf32> to vector<2x16x128xf32>
    %9 = vector.shape_cast %7 : vector<32x128xf32> to vector<2x16x128xf32>
    %cst_7 = arith.constant dense<0xFF800000> : vector<2x128xf32>
    %10 = vector.multi_reduction <maximumf>, %8, %cst_7 [1] : vector<2x16x128xf32> to vector<2x128xf32>
    %11 = vector.shape_cast %10 : vector<2x128xf32> to vector<2x1x128xf32>
    %12 = vector.broadcast %11 : vector<2x1x128xf32> to vector<2x16x128xf32>
    %13 = arith.subf %8, %12 : vector<2x16x128xf32>
    %14 = math.exp %13 : vector<2x16x128xf32>
    %15 = arith.mulf %14, %9 : vector<2x16x128xf32>
    %cst_8 = arith.constant dense<0.000000e+00> : vector<2x128xf32>
    %16 = vector.multi_reduction <add>, %15, %cst_8 [1] : vector<2x16x128xf32> to vector<2x128xf32>
    %cst_9 = arith.constant dense<0.000000e+00> : vector<2x128xf32>
    %17 = vector.multi_reduction <add>, %14, %cst_9 [1] : vector<2x16x128xf32> to vector<2x128xf32>
    %18 = tpu.reciprocal %17 {approx = true} : vector<2x128xf32> -> vector<2x128xf32>
    %19 = arith.mulf %16, %18 : vector<2x128xf32>
    %c0_10 = arith.constant 0 : index
    %c0_11 = arith.constant 0 : index
    %20 = vector.load %arg8[%c0_10, %c0_11] : memref<1x128xf32, #tpu.memory_space<vmem>>, vector<1x128xf32>
    %21 = vector.broadcast %20 : vector<1x128xf32> to vector<2x128xf32>
    %22 = arith.addf %19, %21 : vector<2x128xf32>
    %c0_12 = arith.constant 0 : index
    %c0_13 = arith.constant 0 : index
    %23 = vector.load %arg9[%c0_12, %c0_13] : memref<2x128xf32, #tpu.memory_space<vmem>>, vector<2x128xf32>
    tpu.vector_store %arg9[%c0_12, %c0_13], %22 {strides = array<i32>} : memref<2x128xf32, #tpu.memory_space<vmem>>, vector<2x128xf32>,
    return
  }
  func.func @transform_0(%arg0: i32, %arg1: i32) -> (i32, i32) {
    %c0_i32 = arith.constant 0 : i32
    %c0_i32_0 = arith.constant 0 : i32
    return %arg0, %c0_i32 : i32, i32
  }
  func.func @transform_1(%arg0: i32, %arg1: i32) -> (i32, i32) {
    %c0_i32 = arith.constant 0 : i32
    %c0_i32_0 = arith.constant 0 : i32
    return %arg0, %c0_i32 : i32, i32
  }
  func.func @transform_2(%arg0: i32, %arg1: i32) -> (i32, i32) {
    %c0_i32 = arith.constant 0 : i32
    %c0_i32_0 = arith.constant 0 : i32
    %c0_i32_1 = arith.constant 0 : i32
    return %c0_i32, %c0_i32_0 : i32, i32
  }
  func.func @transform_3(%arg0: i32, %arg1: i32) -> (i32, i32) {
    %c0_i32 = arith.constant 0 : i32
    %c0_i32_0 = arith.constant 0 : i32
    %c0_i32_1 = arith.constant 0 : i32
    return %c0_i32, %c0_i32_0 : i32, i32
  }
  func.func @transform_4(%arg0: i32, %arg1: i32) -> (i32, i32) {
    %c0_i32 = arith.constant 0 : i32
    %c0_i32_0 = arith.constant 0 : i32
    return %c0_i32, %arg1 : i32, i32
  }
  func.func @transform_5(%arg0: i32, %arg1: i32) -> (i32, i32) {
    %c0_i32 = arith.constant 0 : i32
    %c0_i32_0 = arith.constant 0 : i32
    return %c0_i32, %arg1 : i32, i32
  }
  func.func @transform_6(%arg0: i32, %arg1: i32) -> (i32, i32) {
    %c0_i32 = arith.constant 0 : i32
    %c0_i32_0 = arith.constant 0 : i32
    return %c0_i32, %arg1 : i32, i32
  }
  func.func @transform_7(%arg0: i32, %arg1: i32) -> (i32, i32) {
    %c0_i32 = arith.constant 0 : i32
    return %arg0, %arg1 : i32, i32
  }
}

</mosaic_0001>

<llo_original>
// kernel: tpu_custom_call.1
$region0: #{tpu_custom_call.1}
  #allocation0 [shape = 'u32[]', space=smem, size = 0x4, offset = 0x4, fixed_abs, tag = 'smem constant byte address 0x4 - core index']
  #allocation1 [shape = 'u32[144,128]{1,0:T(1,128)}', space=vmem, size = 0x12000, scoped, tag = 'internal scratch']
  #allocation2 [shape = 'bf16[32,128]{1,0:T(8,128)(2,1)}', space=vmem, size = 0x2000, scoped, tag = 'scratch operand']
  %s0 = inlined_call_operand.vmem [shape: bf16[32,32], index: 0, kind: input, shape index: {}]
  %s1 = inlined_call_operand.vmem [shape: f32[32,1], index: 1, kind: input, shape index: {}]
  %s2 = inlined_call_operand.hbm [shape: bf16[128,128], index: 2, kind: input, shape index: {}]
  %s3 = inlined_call_operand.vmem [shape: f32[1,128], index: 3, kind: input, shape index: {}]
  %s4 = inlined_call_operand.hbm [shape: bf16[128,128], index: 4, kind: input, shape index: {}]
  %s5 = inlined_call_operand.hbm [shape: bf16[128,128], index: 5, kind: input, shape index: {}]
  %s6 = inlined_call_operand.vmem [shape: f32[1,128], index: 6, kind: input, shape index: {}]
  %s7 = inlined_call_operand.hbm [shape: f32[2,128], index: 7, kind: output, shape index: {}]
  %s8 = sld [smem:[#allocation0]]
  $region54: #{tpu_custom_call.1} parent=0
    _
  %s10 = ssub.s32 1, %s8
  %s11 = scalar_select 0, %s10, %s8
  $region1: #{tpu_custom_call.1} parent=0
    #allocation3 [shape = 'u8[32768]{0}', space=vmem, size = 0x8000, scoped, tag = 'input window, operand 2, single buffered']
    #allocation4 [shape = 's32[1]{0}', space=sflag, size = 0x4, scoped, tag = 'scoped memory for tpu_custom_call.1']
    #allocation5 [shape = 's32[1]{0}', space=sflag, size = 0x4, scoped, tag = 'scoped memory for tpu_custom_call.1']
    #allocation6 [shape = 'u8[32768]{0}', space=vmem, size = 0x8000, scoped, tag = 'input window, operand 4, single buffered']
    #allocation7 [shape = 's32[1]{0}', space=sflag, size = 0x4, scoped, tag = 'scoped memory for tpu_custom_call.1']
    #allocation8 [shape = 'u8[32768]{0}', space=vmem, size = 0x8000, scoped, tag = 'input window, operand 5, single buffered']
    #allocation9 [shape = 'u8[1024]{0}', space=vmem, size = 0x400, scoped, tag = 'output window, operand 0, single buffered']
    %12 = vsyncpa [#allocation4], 0
    %13 = vsyncpa [#allocation7], 0
    %14 = vsyncpa [#allocation5], 0
    // Predicated region
    $region2: #{tpu_custom_call.1} parent=1 // pred_check
      _
    $region3: #{tpu_custom_call.1} parent=1 // pred_check_branch
      %16 = sbr.rel (0) target = $region5
    $region4: #{tpu_custom_call.1} parent=1 // pred_region
      _
    $region5: #{tpu_custom_call.1} parent=1 // pred_fallthru
      _
    // Predicated region
    $region6: #{tpu_custom_call.1} parent=1 // pred_check
      _
    $region7: #{tpu_custom_call.1} parent=1 // pred_check_branch
      %18 = sbr.rel (0) target = $region9
    $region8: #{tpu_custom_call.1} parent=1 // pred_region
      _
    $region9: #{tpu_custom_call.1} parent=1 // pred_fallthru
      _
    // Predicated region
    $region10: #{tpu_custom_call.1} parent=1 // pred_check
      _
    $region11: #{tpu_custom_call.1} parent=1 // pred_check_branch
      %20 = sbr.rel (0) target = $region13
    $region12: #{tpu_custom_call.1} parent=1 // pred_region
      %s22 = ssub.s32 1024, 1024
      %23 = vsyncadd [#allocation4], %s22
      %s24 = sshll.u32 [#allocation3], 4
      %s25 = int_to_ptr.vmem [resolvable:$true] %s24
      %30 = dma.hbm_to_vmem [thread:$0]  %s2, 1024, %s25, [#allocation4], 64, 64, 4
    $region13: #{tpu_custom_call.1} parent=1 // pred_fallthru
      _
    // Predicated region
    $region14: #{tpu_custom_call.1} parent=1 // pred_check
      _
    $region15: #{tpu_custom_call.1} parent=1 // pred_check_branch
      %32 = sbr.rel (0) target = $region17
    $region16: #{tpu_custom_call.1} parent=1 // pred_region
      _
    $region17: #{tpu_custom_call.1} parent=1 // pred_fallthru
      _
    // Predicated region
    $region18: #{tpu_custom_call.1} parent=1 // pred_check
      _
    $region19: #{tpu_custom_call.1} parent=1 // pred_check_branch
      %34 = sbr.rel (0) target = $region21
    $region20: #{tpu_custom_call.1} parent=1 // pred_region
      %s36 = ssub.s32 1024, 1024
      %37 = vsyncadd [#allocation7], %s36
      %s38 = sshll.u32 [#allocation6], 4
      %s39 = int_to_ptr.vmem [resolvable:$true] %s38
      %44 = dma.hbm_to_vmem [thread:$0]  %s4, 1024, %s39, [#allocation7], 64, 64, 4
    $region21: #{tpu_custom_call.1} parent=1 // pred_fallthru
      _
    // Predicated region
    $region22: #{tpu_custom_call.1} parent=1 // pred_check
      _
    $region23: #{tpu_custom_call.1} parent=1 // pred_check_branch
      %46 = sbr.rel (0) target = $region25
    $region24: #{tpu_custom_call.1} parent=1 // pred_region
      %s48 = ssub.s32 1024, 1024
      %49 = vsyncadd [#allocation7], %s48
      %s50 = sshll.u32 [#allocation8], 4
      %s51 = int_to_ptr.vmem [resolvable:$true] %s50
      %56 = dma.hbm_to_vmem [thread:$0]  %s5, 1024, %s51, [#allocation7], 64, 64, 4
    $region25: #{tpu_custom_call.1} parent=1 // pred_fallthru
      _
    // Predicated region
    $region26: #{tpu_custom_call.1} parent=1 // pred_check
      _
    $region27: #{tpu_custom_call.1} parent=1 // pred_check_branch
      %58 = sbr.rel (0) target = $region29
    $region28: #{tpu_custom_call.1} parent=1 // pred_region
      _
    $region29: #{tpu_custom_call.1} parent=1 // pred_fallthru
      _
    // Predicated region
    $region30: #{tpu_custom_call.1} parent=1 // pred_check
      _
    $region31: #{tpu_custom_call.1} parent=1 // pred_check_branch
      %60 = sbr.rel (0) target = $region33
    $region32: #{tpu_custom_call.1} parent=1 // pred_region
      %61 = dma.done [#allocation4], 1024
    $region33: #{tpu_custom_call.1} parent=1 // pred_fallthru
      _
    // Predicated region
    $region34: #{tpu_custom_call.1} parent=1 // pred_check
      _
    $region35: #{tpu_custom_call.1} parent=1 // pred_check_branch
      %63 = sbr.rel (0) target = $region37
    $region36: #{tpu_custom_call.1} parent=1 // pred_region
      %64 = dma.done [#allocation7], 1024
    $region37: #{tpu_custom_call.1} parent=1 // pred_fallthru
      _
    // Predicated region
    $region38: #{tpu_custom_call.1} parent=1 // pred_check
      _
    $region39: #{tpu_custom_call.1} parent=1 // pred_check_branch
      %66 = sbr.rel (0) target = $region41
    $region40: #{tpu_custom_call.1} parent=1 // pred_region
      %67 = dma.done [#allocation7], 1024
    $region41: #{tpu_custom_call.1} parent=1 // pred_fallthru
      _
    %p69 = scmp.eq.s32.totalorder 0, 0
    // Predicated region
    $region42: #{tpu_custom_call.1} parent=1 // pred_check
      %p70 = pneg %p69
    $region43: #{tpu_custom_call.1} parent=1 // pred_check_branch
      %72 = sbr.rel (%p70) target = $region45
    $region44: #{tpu_custom_call.1} parent=1 // pred_region
      %v73 = vld [vmem:[%s0] sm:$0xf]
      %v74 = vld [vmem:[%s0 + $0x4] sm:$0xf]
      %v75 = vld [vmem:[%s0 + $0x8] sm:$0xf]
      %v76 = vld [vmem:[%s0 + $0xc] sm:$0xf]
      %v77 = vunpack.c.l.bf16 %v73
      %v78 = vunpack.c.l.bf16 %v74
      %v79 = vunpack.c.l.bf16 %v75
      %v80 = vunpack.c.l.bf16 %v76
      %v81 = vld [vmem:[%s1] sm:$0xff]
      %v82 = vld [vmem:[%s1 + $0x8] sm:$0xff]
      %v83 = vld [vmem:[%s1 + $0x10] sm:$0xff]
      %v84 = vld [vmem:[%s1 + $0x18] sm:$0xff]
      %86 = vset.pattern.permute.xlu0 0
      %87 = vperm.xlu0 %86, %v81
      %v88 = vpop.permute.xlu0 %87
      %91 = vset.pattern.permute.xlu0 0
      %92 = vperm.xlu0 %91, %v82
      %v93 = vpop.permute.xlu0 %92
      %96 = vset.pattern.permute.xlu0 0
      %97 = vperm.xlu0 %96, %v83
      %v98 = vpop.permute.xlu0 %97
      %101 = vset.pattern.permute.xlu0 0
      %102 = vperm.xlu0 %101, %v84
      %v103 = vpop.permute.xlu0 %102
      %v105 = vmul.f32 %v77, %v88
      %v106 = vmul.f32 %v78, %v93
      %v107 = vmul.f32 %v79, %v98
      %v108 = vmul.f32 %v80, %v103
      %v109 = vlaneseq
      %v110 = vshrl.u32 %v109, 7
      %v111 = vadd.s32 %v110, 8
      %v112 = vadd.s32 %v110, 16
      %v113 = vadd.s32 %v110, 24
      %vm114 = vcmp.lt.s32.totalorder %v110, 0
      %v115 = vsub.s32 0, %v110
      %v116 = vsel %vm114, %v115, %v110
      %v117 = vshrl.u32 %v116, 4
      %v118 = vand.u32 %v116, 15
      %v119 = vsub.s32 0, %v118
      %v120 = vsel %vm114, %v119, %v118
      %vm121 = vcmp.lt.s32.totalorder %v111, 0
      %v122 = vsub.s32 0, %v111
      %v123 = vsel %vm121, %v122, %v111
      %v124 = vshrl.u32 %v123, 4
      %v125 = vand.u32 %v123, 15
      %v126 = vsub.s32 0, %v125
      %v127 = vsel %vm121, %v126, %v125
      %vm128 = vcmp.lt.s32.totalorder %v112, 0
      %v129 = vsub.s32 0, %v112
      %v130 = vsel %vm128, %v129, %v112
      %v131 = vshrl.u32 %v130, 4
      %v132 = vand.u32 %v130, 15
      %v133 = vsub.s32 0, %v132
      %v134 = vsel %vm128, %v133, %v132
      %vm135 = vcmp.lt.s32.totalorder %v113, 0
      %v136 = vsub.s32 0, %v113
      %v137 = vsel %vm135, %v136, %v113
      %v138 = vshrl.u32 %v137, 4
      %v139 = vand.u32 %v137, 15
      %v140 = vsub.s32 0, %v139
      %v141 = vsel %vm135, %v140, %v139
      %vm142 = vcmp.ne.s32.totalorder %v120, 0
      %vm143 = vcmp.ne.s32.totalorder %v127, 0
      %vm144 = vcmp.ne.s32.totalorder %v134, 0
      %vm145 = vcmp.ne.s32.totalorder %v141, 0
      %vm146 = vcmp.lt.s32.totalorder %v120, 0
      %vm147 = vcmp.lt.s32.totalorder %v127, 0
      %vm148 = vcmp.lt.s32.totalorder %v134, 0
      %vm149 = vcmp.lt.s32.totalorder %v141, 0
      %vm150 = vmand %vm146, %vm142
      %vm151 = vmand %vm147, %vm143
      %vm152 = vmand %vm148, %vm144
      %vm153 = vmand %vm149, %vm145
      %v154 = vadd.s32 %v120, 16
      %v155 = vadd.s32 %v127, 16
      %v156 = vadd.s32 %v134, 16
      %v157 = vadd.s32 %v141, 16
      %v158 = vsel %vm150, %v154, %v120
      %v159 = vsel %vm151, %v155, %v127
      %v160 = vsel %vm152, %v156, %v134
      %v161 = vsel %vm153, %v157, %v141
      %vm166 = vcmask 1040384
      %v167 = vrot.slane %v105, 7
      %v168 = vrot.slane %v106, 7
      %v169 = vsel %vm166, %v167, %v168
      %v170 = vrot.slane %v107, 7
      %v171 = vsel %vm166, %v168, %v170
      %v172 = vrot.slane %v108, 7
      %v173 = vsel %vm166, %v170, %v172
      %v178 = vsel %vm166, 0.0, %v167
      %vm179 = vcmp.eq.s32.totalorder %v158, 0
      %vm180 = vcmp.eq.s32.totalorder %v159, 0
      %vm181 = vcmp.eq.s32.totalorder %v160, 0
      %vm182 = vcmp.eq.s32.totalorder %v161, 0
      %v183 = vsel %vm179, 1, 0
      %v184 = vsel %vm180, 1, 0
      %v185 = vsel %vm181, 1, 0
      %v186 = vsel %vm182, 1, 0
      %vm187 = vcmp.eq.s32.totalorder %v183, 1
      %vm188 = vcmp.eq.s32.totalorder %v184, 1
      %vm189 = vcmp.eq.s32.totalorder %v185, 1
      %vm190 = vcmp.eq.s32.totalorder %v186, 1
      %v191 = vsel %vm187, 0.0, %v178
      %v192 = vsel %vm188, 0.0, %v169
      %v193 = vsel %vm189, 0.0, %v171
      %v194 = vsel %vm190, 0.0, %v173
      %vm195 = vcmask 1046528
      %v196 = vrot.slane %v105, 1
      %v197 = vrot.slane %v106, 1
      %v198 = vsel %vm195, %v196, %v197
      %v199 = vrot.slane %v107, 1
      %v200 = vsel %vm195, %v197, %v199
      %v201 = vrot.slane %v108, 1
      %v202 = vsel %vm195, %v199, %v201
      %v207 = vsel %vm195, %v201, 0.0
      %vm208 = vcmp.eq.s32.totalorder %v158, 15
      %vm209 = vcmp.eq.s32.totalorder %v159, 15
      %vm210 = vcmp.eq.s32.totalorder %v160, 15
      %vm211 = vcmp.eq.s32.totalorder %v161, 15
      %v212 = vsel %vm208, 1, 0
      %v213 = vsel %vm209, 1, 0
      %v214 = vsel %vm210, 1, 0
      %v215 = vsel %vm211, 1, 0
      %vm216 = vcmp.eq.s32.totalorder %v212, 1
      %vm217 = vcmp.eq.s32.totalorder %v213, 1
      %vm218 = vcmp.eq.s32.totalorder %v214, 1
      %vm219 = vcmp.eq.s32.totalorder %v215, 1
      %v220 = vsel %vm216, 0.0, %v198
      %v221 = vsel %vm217, 0.0, %v200
      %v222 = vsel %vm218, 0.0, %v202
      %v223 = vsel %vm219, 0.0, %v207
      %224 = vrot.lane.b32.xlu0 %v105, 32
      %v225 = vpop.permute.xlu0 %224
      %226 = vrot.lane.b32.xlu0 %v106, 32
      %v227 = vpop.permute.xlu0 %226
      %228 = vrot.lane.b32.xlu0 %v107, 32
      %v229 = vpop.permute.xlu0 %228
      %230 = vrot.lane.b32.xlu0 %v108, 32
      %v231 = vpop.permute.xlu0 %230
      %240 = vrot.lane.b32.xlu0 %v220, 64
      %v241 = vpop.permute.xlu0 %240
      %242 = vrot.lane.b32.xlu0 %v221, 64
      %v243 = vpop.permute.xlu0 %242
      %244 = vrot.lane.b32.xlu0 %v222, 64
      %v245 = vpop.permute.xlu0 %244
      %246 = vrot.lane.b32.xlu0 %v223, 64
      %v247 = vpop.permute.xlu0 %246
      %vm252 = vcmask 261120
      %v253 = vsel %vm252, %v191, %v225
      %v254 = vsel %vm252, %v192, %v227
      %v255 = vsel %vm252, %v193, %v229
      %v256 = vsel %vm252, %v194, %v231
      %vm257 = vcmask 523264
      %v258 = vsel %vm257, %v253, %v241
      %v259 = vsel %vm257, %v254, %v243
      %v260 = vsel %vm257, %v255, %v245
      %v261 = vsel %vm257, %v256, %v247
      %vm262 = vcmask 785408
      %v263 = vsel %vm262, %v258, 0.0
      %v264 = vsel %vm262, %v259, 0.0
      %v265 = vsel %vm262, %v260, 0.0
      %v266 = vsel %vm262, %v261, 0.0
      %v267 = vpack.c.bf16 %v264, %v263
      %v268 = vpack.c.bf16 %v266, %v265
      %v269 = vld [vmem:[#allocation3] sm:$0xf]
      %v270 = vld [vmem:[#allocation3 + $0x4] sm:$0xf]
      %v271 = vld [vmem:[#allocation3 + $0x8] sm:$0xf]
      %v272 = vld [vmem:[#allocation3 + $0xc] sm:$0xf]
      %v273 = vld [vmem:[#allocation3 + $0x10] sm:$0xf]
      %v274 = vld [vmem:[#allocation3 + $0x14] sm:$0xf]
      %v275 = vld [vmem:[#allocation3 + $0x18] sm:$0xf]
      %v276 = vld [vmem:[#allocation3 + $0x1c] sm:$0xf]
      %v277 = vld [vmem:[#allocation3 + $0x20] sm:$0xf]
      %v278 = vld [vmem:[#allocation3 + $0x24] sm:$0xf]
      %v279 = vld [vmem:[#allocation3 + $0x28] sm:$0xf]
      %v280 = vld [vmem:[#allocation3 + $0x2c] sm:$0xf]
      %v281 = vld [vmem:[#allocation3 + $0x30] sm:$0xf]
      %v282 = vld [vmem:[#allocation3 + $0x34] sm:$0xf]
      %v283 = vld [vmem:[#allocation3 + $0x38] sm:$0xf]
      %v284 = vld [vmem:[#allocation3 + $0x3c] sm:$0xf]
      %v285 = vld [vmem:[%s3] sm:$0x1]
      %v287 = vlaneseq
      %v288 = vshrl.u32 %v287, 7
      %v289 = vsub.s32 0, %v288
      %v290 = vrot.slane %v285, %v289
      %v308 = vunpack.c.l.b16 %v269
      %v309 = vunpack.c.l.b16 %v270
      %v310 = vunpack.c.l.b16 %v271
      %v311 = vunpack.c.l.b16 %v272
      %v312 = vunpack.c.l.b16 %v273
      %v313 = vunpack.c.l.b16 %v274
      %v314 = vunpack.c.l.b16 %v275
      %v315 = vunpack.c.l.b16 %v276
      %v316 = vunpack.c.l.b16 %v277
      %v317 = vunpack.c.l.b16 %v278
      %v318 = vunpack.c.l.b16 %v279
      %v319 = vunpack.c.l.b16 %v280
      %v320 = vunpack.c.l.b16 %v281
      %v321 = vunpack.c.l.b16 %v282
      %v322 = vunpack.c.l.b16 %v283
      %v323 = vunpack.c.l.b16 %v284
      %v324 = vpack.c.b16 %v309, %v308
      %v325 = vpack.c.b16 %v311, %v310
      %v326 = vpack.c.b16 %v313, %v312
      %v327 = vpack.c.b16 %v315, %v314
      %v328 = vpack.c.b16 %v317, %v316
      %v329 = vpack.c.b16 %v319, %v318
      %v330 = vpack.c.b16 %v321, %v320
      %v331 = vpack.c.b16 %v323, %v322
      %340 = vmatprep.subr.bf16.mxu0 0
      %341 = vmatpush1.bf16.msra.mxu0 %v331
      %342 = vmatprep.subr.bf16.mxu0 0
      %343 = vmatpush1.bf16.msra.mxu0 %v330
      %344 = vmatprep.subr.bf16.mxu0 0
      %345 = vmatpush1.bf16.msra.mxu0 %v329
      %346 = vmatprep.subr.bf16.mxu0 0
      %347 = vmatpush1.bf16.msra.mxu0 %v328
      %348 = vmatprep.subr.bf16.mxu0 0
      %349 = vmatpush1.bf16.msra.mxu0 %v327
      %350 = vmatprep.subr.bf16.mxu0 0
      %351 = vmatpush1.bf16.msra.mxu0 %v326
      %352 = vmatprep.subr.bf16.mxu0 0
      %353 = vmatpush1.bf16.msra.mxu0 %v325
      %354 = vmatprep.subr.bf16.mxu0 0
      %355 = vmatpush1.bf16.msra.mxu0 %v324
      %356 = vmatprep.subr.bf16.mxu0 0
      %357 = vmatpush2.bf16.msra.mxu0 0
      %358 = vmatprep.subr.bf16.mxu0 0
      %359 = vmatpush2.bf16.msra.mxu0 0
      %360 = vmatprep.subr.bf16.mxu0 0
      %361 = vmatpush2.bf16.msra.mxu0 0
      %362 = vmatprep.subr.bf16.mxu0 0
      %363 = vmatpush2.bf16.msra.mxu0 0
      %364 = vmatprep.subr.bf16.mxu0 0
      %365 = vmatpush2.bf16.msra.mxu0 0
      %366 = vmatprep.subr.bf16.mxu0 0
      %367 = vmatpush2.bf16.msra.mxu0 0
      %368 = vmatprep.subr.bf16.mxu0 0
      %369 = vmatpush2.bf16.msra.mxu0 0
      %370 = vmatprep.subr.bf16.mxu0 0
      %371 = vmatpush2.bf16.msra.mxu0 0
      %372 = vmatprep.mubr.bf16.mxu0 0
      %373 = vmatmul.mubr.bf16.gmra.mxu0 %v267
      %v374 = vpop.f32.mrf.mxu0
      %v375 = vadd.f32 %v290, %v374
      %v376 = vpop.f32.mrf.mxu0
      %v377 = vpop.f32.mrf.mxu0
      %v378 = vadd.f32 %v290, %v377
      %v379 = vpop.f32.mrf.mxu0
      %380 = vmatprep.mubr.bf16.mxu0 0
      %381 = vmatmul.mubr.bf16.gmra.mxu0 %v268
      %v382 = vpop.f32.mrf.mxu0
      %v383 = vadd.f32 %v290, %v382
      %v384 = vpop.f32.mrf.mxu0
      %v385 = vpop.f32.mrf.mxu0
      %v386 = vadd.f32 %v290, %v385
      %v387 = vpop.f32.mrf.mxu0
      %388 = vdwg.mxu0
      %v389 = vtanh.pop %v375
      %v390 = vtanh.pop %v378
      %v391 = vtanh.pop %v383
      %v392 = vtanh.pop %v386
      %v393 = vpack.c.bf16 %v390, %v389
      %v394 = vpack.c.bf16 %v392, %v391
      %v397 = vunpack.c.l.b16 %v393
      %v398 = vunpack.c.h.b16 %v393
      %v399 = vunpack.c.l.b16 %v394
      %v400 = vunpack.c.h.b16 %v394
      %v401 = vpack.c.b16 %v397, %v397
      %v402 = vpack.c.b16 %v398, %v398
      %v403 = vpack.c.b16 %v399, %v399
      %v404 = vpack.c.b16 %v400, %v400
      %409 = vst [vmem:[#allocation2] sm:$0xf] %v401
      %410 = vst [vmem:[#allocation2 + $0x4] sm:$0xf] %v402
      %411 = vst [vmem:[#allocation2 + $0x8] sm:$0xf] %v403
      %412 = vst [vmem:[#allocation2 + $0xc] sm:$0xf] %v404
    $region45: #{tpu_custom_call.1} parent=1 // pred_fallthru
      _
    %v413 = vld [vmem:[#allocation2] sm:$0xf]
    %v414 = vld [vmem:[#allocation2 + $0x4] sm:$0xf]
    %v415 = vld [vmem:[#allocation2 + $0x8] sm:$0xf]
    %v416 = vld [vmem:[#allocation2 + $0xc] sm:$0xf]
    %v417 = vld [vmem:[#allocation6] sm:$0xf]
    %v418 = vld [vmem:[#allocation6 + $0x4] sm:$0xf]
    %v419 = vld [vmem:[#allocation6 + $0x8] sm:$0xf]
    %v420 = vld [vmem:[#allocation6 + $0xc] sm:$0xf]
    %v421 = vld [vmem:[#allocation6 + $0x10] sm:$0xf]
    %v422 = vld [vmem:[#allocation6 + $0x14] sm:$0xf]
    %v423 = vld [vmem:[#allocation6 + $0x18] sm:$0xf]
    %v424 = vld [vmem:[#allocation6 + $0x1c] sm:$0xf]
    %v425 = vld [vmem:[#allocation6 + $0x20] sm:$0xf]
    %v426 = vld [vmem:[#allocation6 + $0x24] sm:$0xf]
    %v427 = vld [vmem:[#allocation6 + $0x28] sm:$0xf]
    %v428 = vld [vmem:[#allocation6 + $0x2c] sm:$0xf]
    %v429 = vld [vmem:[#allocation6 + $0x30] sm:$0xf]
    %v430 = vld [vmem:[#allocation6 + $0x34] sm:$0xf]
    %v431 = vld [vmem:[#allocation6 + $0x38] sm:$0xf]
    %v432 = vld [vmem:[#allocation6 + $0x3c] sm:$0xf]
    %v437 = vunpack.c.l.b16 %v413
    %v438 = vunpack.c.l.b16 %v414
    %v439 = vunpack.c.l.b16 %v415
    %v440 = vunpack.c.l.b16 %v416
    %v441 = vpack.c.b16 %v438, %v437
    %v442 = vpack.c.b16 %v440, %v439
    %v461 = vunpack.c.l.b16 %v417
    %v462 = vunpack.c.l.b16 %v418
    %v463 = vunpack.c.l.b16 %v419
    %v464 = vunpack.c.l.b16 %v420
    %v465 = vunpack.c.l.b16 %v421
    %v466 = vunpack.c.l.b16 %v422
    %v467 = vunpack.c.l.b16 %v423
    %v468 = vunpack.c.l.b16 %v424
    %v469 = vunpack.c.l.b16 %v425
    %v470 = vunpack.c.l.b16 %v426
    %v471 = vunpack.c.l.b16 %v427
    %v472 = vunpack.c.l.b16 %v428
    %v473 = vunpack.c.l.b16 %v429
    %v474 = vunpack.c.l.b16 %v430
    %v475 = vunpack.c.l.b16 %v431
    %v476 = vunpack.c.l.b16 %v432
    %v477 = vpack.c.b16 %v462, %v461
    %v478 = vpack.c.b16 %v464, %v463
    %v479 = vpack.c.b16 %v466, %v465
    %v480 = vpack.c.b16 %v468, %v467
    %v481 = vpack.c.b16 %v470, %v469
    %v482 = vpack.c.b16 %v472, %v471
    %v483 = vpack.c.b16 %v474, %v473
    %v484 = vpack.c.b16 %v476, %v475
    %493 = vmatprep.subr.bf16.mxu0 0
    %494 = vmatpush1.bf16.msra.mxu0 %v484
    %495 = vmatprep.subr.bf16.mxu0 0
    %496 = vmatpush1.bf16.msra.mxu0 %v483
    %497 = vmatprep.subr.bf16.mxu0 0
    %498 = vmatpush1.bf16.msra.mxu0 %v482
    %499 = vmatprep.subr.bf16.mxu0 0
    %500 = vmatpush1.bf16.msra.mxu0 %v481
    %501 = vmatprep.subr.bf16.mxu0 0
    %502 = vmatpush1.bf16.msra.mxu0 %v480
    %503 = vmatprep.subr.bf16.mxu0 0
    %504 = vmatpush1.bf16.msra.mxu0 %v479
    %505 = vmatprep.subr.bf16.mxu0 0
    %506 = vmatpush1.bf16.msra.mxu0 %v478
    %507 = vmatprep.subr.bf16.mxu0 0
    %508 = vmatpush1.bf16.msra.mxu0 %v477
    %509 = vmatprep.subr.bf16.mxu0 0
    %510 = vmatpush2.bf16.msra.mxu0 0
    %511 = vmatprep.subr.bf16.mxu0 0
    %512 = vmatpush2.bf16.msra.mxu0 0
    %513 = vmatprep.subr.bf16.mxu0 0
    %514 = vmatpush2.bf16.msra.mxu0 0
    %515 = vmatprep.subr.bf16.mxu0 0
    %516 = vmatpush2.bf16.msra.mxu0 0
    %517 = vmatprep.subr.bf16.mxu0 0
    %518 = vmatpush2.bf16.msra.mxu0 0
    %519 = vmatprep.subr.bf16.mxu0 0
    %520 = vmatpush2.bf16.msra.mxu0 0
    %521 = vmatprep.subr.bf16.mxu0 0
    %522 = vmatpush2.bf16.msra.mxu0 0
    %523 = vmatprep.subr.bf16.mxu0 0
    %524 = vmatpush2.bf16.msra.mxu0 0
    %525 = vmatprep.mubr.bf16.mxu0 0
    %526 = vmatmul.mubr.bf16.gmra.mxu0 %v441
    %v527 = vpop.f32.mrf.mxu0
    %v528 = vadd.f32 0.0, %v527
    %v529 = vpop.f32.mrf.mxu0
    %v530 = vpop.f32.mrf.mxu0
    %v531 = vadd.f32 0.0, %v530
    %v532 = vpop.f32.mrf.mxu0
    %533 = vmatprep.mubr.bf16.mxu0 0
    %534 = vmatmul.mubr.bf16.gmra.mxu0 %v442
    %v535 = vpop.f32.mrf.mxu0
    %v536 = vadd.f32 0.0, %v535
    %v537 = vpop.f32.mrf.mxu0
    %v538 = vpop.f32.mrf.mxu0
    %v539 = vadd.f32 0.0, %v538
    %v540 = vpop.f32.mrf.mxu0
    %541 = vdwg.mxu0
    %v542 = vld [vmem:[#allocation8] sm:$0xf]
    %v543 = vld [vmem:[#allocation8 + $0x4] sm:$0xf]
    %v544 = vld [vmem:[#allocation8 + $0x8] sm:$0xf]
    %v545 = vld [vmem:[#allocation8 + $0xc] sm:$0xf]
    %v546 = vld [vmem:[#allocation8 + $0x10] sm:$0xf]
    %v547 = vld [vmem:[#allocation8 + $0x14] sm:$0xf]
    %v548 = vld [vmem:[#allocation8 + $0x18] sm:$0xf]
    %v549 = vld [vmem:[#allocation8 + $0x1c] sm:$0xf]
    %v550 = vld [vmem:[#allocation8 + $0x20] sm:$0xf]
    %v551 = vld [vmem:[#allocation8 + $0x24] sm:$0xf]
    %v552 = vld [vmem:[#allocation8 + $0x28] sm:$0xf]
    %v553 = vld [vmem:[#allocation8 + $0x2c] sm:$0xf]
    %v554 = vld [vmem:[#allocation8 + $0x30] sm:$0xf]
    %v555 = vld [vmem:[#allocation8 + $0x34] sm:$0xf]
    %v556 = vld [vmem:[#allocation8 + $0x38] sm:$0xf]
    %v557 = vld [vmem:[#allocation8 + $0x3c] sm:$0xf]
    %v574 = vunpack.c.l.b16 %v542
    %v575 = vunpack.c.l.b16 %v543
    %v576 = vunpack.c.l.b16 %v544
    %v577 = vunpack.c.l.b16 %v545
    %v578 = vunpack.c.l.b16 %v546
    %v579 = vunpack.c.l.b16 %v547
    %v580 = vunpack.c.l.b16 %v548
    %v581 = vunpack.c.l.b16 %v549
    %v582 = vunpack.c.l.b16 %v550
    %v583 = vunpack.c.l.b16 %v551
    %v584 = vunpack.c.l.b16 %v552
    %v585 = vunpack.c.l.b16 %v553
    %v586 = vunpack.c.l.b16 %v554
    %v587 = vunpack.c.l.b16 %v555
    %v588 = vunpack.c.l.b16 %v556
    %v589 = vunpack.c.l.b16 %v557
    %v590 = vpack.c.b16 %v575, %v574
    %v591 = vpack.c.b16 %v577, %v576
    %v592 = vpack.c.b16 %v579, %v578
    %v593 = vpack.c.b16 %v581, %v580
    %v594 = vpack.c.b16 %v583, %v582
    %v595 = vpack.c.b16 %v585, %v584
    %v596 = vpack.c.b16 %v587, %v586
    %v597 = vpack.c.b16 %v589, %v588
    %606 = vmatprep.subr.bf16.mxu0 0
    %607 = vmatpush1.bf16.msra.mxu0 %v597
    %608 = vmatprep.subr.bf16.mxu0 0
    %609 = vmatpush1.bf16.msra.mxu0 %v596
    %610 = vmatprep.subr.bf16.mxu0 0
    %611 = vmatpush1.bf16.msra.mxu0 %v595
    %612 = vmatprep.subr.bf16.mxu0 0
    %613 = vmatpush1.bf16.msra.mxu0 %v594
    %614 = vmatprep.subr.bf16.mxu0 0
    %615 = vmatpush1.bf16.msra.mxu0 %v593
    %616 = vmatprep.subr.bf16.mxu0 0
    %617 = vmatpush1.bf16.msra.mxu0 %v592
    %618 = vmatprep.subr.bf16.mxu0 0
    %619 = vmatpush1.bf16.msra.mxu0 %v591
    %620 = vmatprep.subr.bf16.mxu0 0
    %621 = vmatpush1.bf16.msra.mxu0 %v590
    %622 = vmatprep.subr.bf16.mxu0 0
    %623 = vmatpush2.bf16.msra.mxu0 0
    %624 = vmatprep.subr.bf16.mxu0 0
    %625 = vmatpush2.bf16.msra.mxu0 0
    %626 = vmatprep.subr.bf16.mxu0 0
    %627 = vmatpush2.bf16.msra.mxu0 0
    %628 = vmatprep.subr.bf16.mxu0 0
    %629 = vmatpush2.bf16.msra.mxu0 0
    %630 = vmatprep.subr.bf16.mxu0 0
    %631 = vmatpush2.bf16.msra.mxu0 0
    %632 = vmatprep.subr.bf16.mxu0 0
    %633 = vmatpush2.bf16.msra.mxu0 0
    %634 = vmatprep.subr.bf16.mxu0 0
    %635 = vmatpush2.bf16.msra.mxu0 0
    %636 = vmatprep.subr.bf16.mxu0 0
    %637 = vmatpush2.bf16.msra.mxu0 0
    %638 = vmatprep.mubr.bf16.mxu0 0
    %639 = vmatmul.mubr.bf16.gmra.mxu0 %v441
    %v640 = vpop.f32.mrf.mxu0
    %v641 = vadd.f32 0.0, %v640
    %v642 = vpop.f32.mrf.mxu0
    %v643 = vpop.f32.mrf.mxu0
    %v644 = vadd.f32 0.0, %v643
    %v645 = vpop.f32.mrf.mxu0
    %646 = vmatprep.mubr.bf16.mxu0 0
    %647 = vmatmul.mubr.bf16.gmra.mxu0 %v442
    %v648 = vpop.f32.mrf.mxu0
    %v649 = vadd.f32 0.0, %v648
    %v650 = vpop.f32.mrf.mxu0
    %v651 = vpop.f32.mrf.mxu0
    %v652 = vadd.f32 0.0, %v651
    %v653 = vpop.f32.mrf.mxu0
    %654 = vdwg.mxu0
    %v655 = vmax.f32 %v528, %v531
    %v656 = vrot.slane %v655, 4
    %v657 = vmax.f32 %v655, %v656
    %v658 = vrot.slane %v657, 2
    %v659 = vmax.f32 %v657, %v658
    %v660 = vrot.slane %v659, 1
    %v661 = vmax.f32 %v659, %v660
    %v662 = vmax.f32 %v536, %v539
    %v663 = vrot.slane %v662, 4
    %v664 = vmax.f32 %v662, %v663
    %v665 = vrot.slane %v664, 2
    %v666 = vmax.f32 %v664, %v665
    %v667 = vrot.slane %v666, 1
    %v668 = vmax.f32 %v666, %v667
    %v669 = vsub.f32 %v528, %v661
    %v670 = vsub.f32 %v531, %v661
    %v671 = vsub.f32 %v536, %v668
    %v672 = vsub.f32 %v539, %v668
    %v673 = vmul.f32 %v669, 1.442695
    %v674 = vpow.pop %v673
    %v675 = vmul.f32 %v670, 1.442695
    %v676 = vpow.pop %v675
    %v677 = vmul.f32 %v671, 1.442695
    %v678 = vpow.pop %v677
    %v679 = vmul.f32 %v672, 1.442695
    %v680 = vpow.pop %v679
    %v681 = vmul.f32 %v674, %v641
    %v682 = vmul.f32 %v676, %v644
    %v683 = vmul.f32 %v678, %v649
    %v684 = vmul.f32 %v680, %v652
    %v685 = vadd.f32 %v681, %v682
    %v686 = vrot.slane %v685, 4
    %v687 = vadd.f32 %v685, %v686
    %v688 = vrot.slane %v687, 2
    %v689 = vadd.f32 %v687, %v688
    %v690 = vrot.slane %v689, 1
    %v691 = vadd.f32 %v689, %v690
    %v692 = vadd.f32 %v683, %v684
    %v693 = vrot.slane %v692, 4
    %v694 = vadd.f32 %v692, %v693
    %v695 = vrot.slane %v694, 2
    %v696 = vadd.f32 %v694, %v695
    %v697 = vrot.slane %v696, 1
    %v698 = vadd.f32 %v696, %v697
    %v699 = vadd.f32 %v674, %v676
    %v700 = vrot.slane %v699, 4
    %v701 = vadd.f32 %v699, %v700
    %v702 = vrot.slane %v701, 2
    %v703 = vadd.f32 %v701, %v702
    %v704 = vrot.slane %v703, 1
    %v705 = vadd.f32 %v703, %v704
    %v706 = vadd.f32 %v678, %v680
    %v707 = vrot.slane %v706, 4
    %v708 = vadd.f32 %v706, %v707
    %v709 = vrot.slane %v708, 2
    %v710 = vadd.f32 %v708, %v709
    %v711 = vrot.slane %v710, 1
    %v712 = vadd.f32 %v710, %v711
    %v713 = vrcp.pop %v705
    %v714 = vrcp.pop %v712
    %v715 = vmul.f32 %v691, %v713
    %v716 = vmul.f32 %v698, %v714
    %v717 = vld [vmem:[%s6] sm:$0x1]
    %v719 = vlaneseq
    %v720 = vshrl.u32 %v719, 7
    %v721 = vsub.s32 0, %v720
    %v722 = vrot.slane %v717, %v721
    %v724 = vadd.f32 %v715, %v722
    %v725 = vadd.f32 %v716, %v722
    %v728 = vrot.slane %v725, 7
    %vm729 = vcmask 1041409
    %v730 = vsel %vm729, %v728, %v724
    %732 = vst [vmem:[#allocation9] sm:$0x3] %v730
    // Predicated region
    $region46: #{tpu_custom_call.1} parent=1 // pred_check
      _
    $region47: #{tpu_custom_call.1} parent=1 // pred_check_branch
      %734 = sbr.rel (0) target = $region49
    $region48: #{tpu_custom_call.1} parent=1 // pred_region
      %s736 = ssub.s32 32, 32
      %737 = vsyncadd [#allocation5], %s736
      %s739 = sshll.u32 [#allocation9], 4
      %s740 = int_to_ptr.vmem [resolvable:$true] %s739
      %742 = dma.vmem_to_hbm [thread:$0]  %s740, 32, %s7, [#allocation5]
    $region49: #{tpu_custom_call.1} parent=1 // pred_fallthru
      _
    // Predicated region
    $region50: #{tpu_custom_call.1} parent=1 // pred_check
      _
    $region51: #{tpu_custom_call.1} parent=1 // pred_check_branch
      %744 = sbr.rel (0) target = $region53
    $region52: #{tpu_custom_call.1} parent=1 // pred_region
      %745 = dma.done [#allocation5], 32
    $region53: #{tpu_custom_call.1} parent=1 // pred_fallthru
      _
    %746 = vsyncpa [#allocation4], 1
    %747 = vsyncpa [#allocation7], 1
    %748 = vsyncpa [#allocation5], 1

</llo_original>
